<compile_context>
chip_gen: v6e
topology: v6e:2x2x1
jax: 0.10.0
libtpu: 0.0.40
codegen_flags: <defaults>
</compile_context>

<pallas_src>
import functools

import jax
import jax.numpy as jnp
from jax.experimental import pallas as pl
from jax.experimental.pallas import tpu as pltpu


def _round_up8(n):
    return (n + 7) // 8 * 8


# ----------------------------- Pallas kernel ---------------------------------
def _make_kernel(n_nodes, f_in, hidden, offs):
    (o_w1, o_b1, o_a1, o_w2, o_b2, o_a2, o_wdt) = offs

    def softplus(z):  # numerically stable softplus
        return jnp.maximum(z, 0.0) + jnp.log1p(jnp.exp(-jnp.abs(z)))

    def kernel(xcat_ref, a2_ref, p_ref, out_ref):
        A2 = a2_ref[...]        # [2N, 2N] block-diag(A_mean, A_mean): one fused agg matmul
        h = xcat_ref[...]       # [2N, F_in]; rows [0:N) positive, [N:2N) corrupted

        # static, 8-row-aligned slices into the packed parameter slab
        w1 = p_ref[o_w1:o_w1 + 2 * f_in, :]      # [[w1l],[w1r]]  ([2*F_in, H])
        b1 = p_ref[o_b1:o_b1 + 1, :]
        a1 = p_ref[o_a1:o_a1 + 1, :]
        w2 = p_ref[o_w2:o_w2 + 2 * hidden, :]    # [[w2l],[w2r]]  ([2*H, H])
        b2 = p_ref[o_b2:o_b2 + 1, :]
        a2 = p_ref[o_a2:o_a2 + 1, :]
        wdt = p_ref[o_wdt:o_wdt + hidden, :]     # W_d pre-transposed ([H, H])

        def sage_layer(h_cat, w, b, alpha):
            # mean aggregation for pos & neg in one push (block-diag A2, no relayout)
            agg = jnp.dot(A2, h_cat, preferred_element_type=jnp.float32)     # [2N, f]
            # fused lin_l/lin_r: [agg | h] @ [[wl],[wr]]  (one MXU push)
            cat = jnp.concatenate([agg, h_cat], axis=1)                      # [2N, 2f]
            out = jnp.dot(cat, w, preferred_element_type=jnp.float32) + b    # [2N, H]
            # F.normalize(p=2): x * rsqrt(max(sum(x^2), eps^2)) == x / max(||x||, eps)
            ssq = jnp.sum(out * out, axis=-1, keepdims=True)
            out = out * jax.lax.rsqrt(jnp.maximum(ssq, 1e-24))
            # PReLU with per-channel alpha
            return jnp.where(out > 0, out, alpha * out)

        h = sage_layer(h, w1, b1, a1)
        h = sage_layer(h, w2, b2, a2)            # [2N, H]  pos rows then neg rows

        # summary = sigmoid(mean over positive-node embeddings)
        # NOTE: n_nodes is a multiple of 8 here, so the sublane slice is aligned.
        summary = jax.nn.sigmoid(jnp.mean(h[:n_nodes], axis=0, keepdims=True))  # [1, H]

        # Discriminator: v = W_d @ summary  ->  v_row = summary @ W_d^T  ([1, H])
        v_row = jnp.dot(summary, wdt, preferred_element_type=jnp.float32)

        # logits for both samples at once: VPU broadcast-multiply + lane reduction
        logit = jnp.sum(h * v_row, axis=-1, keepdims=True)                      # [2N, 1]

        # BCEWithLogits, mean reduction; static slices (pos target 1, neg target 0)
        loss = (jnp.sum(softplus(-logit[:n_nodes])) +
                jnp.sum(softplus(logit[n_nodes:]))) * (1.0 / n_nodes)

        out_ref[0, 0] = loss   # scalar store to SMEM

    return kernel


# --------------------- one-time parameter packing (init) ----------------------
def pack_params(params):
    """Pack all parameters into one [rows, H] VMEM slab. Called ONCE at init,
    outside the per-call jitted path (removes ~10 tiny HLO ops per forward)."""
    def pad8(a):
        r = _round_up8(a.shape[0])
        return jnp.pad(a, ((0, r - a.shape[0]), (0, 0)))

    w1 = jnp.concatenate([params["w1l"], params["w1r"]], axis=0)   # [2*F_in, H]
    w2 = jnp.concatenate([params["w2l"], params["w2r"]], axis=0)   # [2*H,   H]
    pieces = [w1, params["b1l"], params["alpha1"],
              w2, params["b2l"], params["alpha2"],
              params["wd"].T]                                      # wd pre-transposed
    padded = [pad8(p) for p in pieces]
    offs, o = [], 0
    for p in padded:
        offs.append(o)
        o += p.shape[0]
    slab = jnp.concatenate(padded, axis=0)                         # [sum_rows, H]
    f_in = params["w1l"].shape[0]
    hidden = params["w1l"].shape[1]
    return slab, tuple(offs), f_in, hidden


# ------------------------------ JAX wrapper -----------------------------------
@functools.partial(jax.jit, static_argnames=("node_cnt", "f_in", "hidden", "offs"))
def infomax_forward(x, edge_index, slab, perm, *, node_cnt, f_in, hidden, offs):
    """Glue: block-diag mean-aggregation matrix + corrupted input, one kernel call."""
    N = node_cnt

    src, dst = edge_index[0], edge_index[1]
    # A2 = block-diag(A_mean, A_mean): A[i, j] = 1/deg_in(i) if edge j->i else 0
    # (isolated nodes -> zero row, like PyG). Built once as [2N, 2N] so the kernel
    # aggregates pos & neg with a single matmul and zero in-kernel relayouts.
    src2 = jnp.concatenate([src, src + N])
    dst2 = jnp.concatenate([dst, dst + N])
    A2 = jnp.zeros((2 * N, 2 * N), jnp.float32).at[dst2, src2].add(1.0)
    A2 = A2 / jnp.maximum(jnp.sum(A2, axis=1, keepdims=True), 1.0)
    # TODO(synk): for real graph sizes (N beyond a few hundred) the dense O(N^2) A must
    # be tiled with a grid (BlockSpec (TN, TK), K axis last, "arbitrary", VMEM-scratch
    # accumulator, bf16 operands, explicit vmem_limit_bytes, and a "parallel" axis for
    # the two v7x TensorCores) or replaced by scalar-prefetch CSR gather; full-array
    # f32 blocks are only appropriate at this tiny N.

    # Fuse positive + corrupted samples into one operand (one DMA, row-stacked).
    # TODO(synk): at larger N, scalar-prefetch perm and gather corrupted rows in-kernel
    # (pl.Element index_map) instead of materializing the duplicated x_cat in HBM.
    x_cat = jnp.concatenate([x, x[perm]], axis=0)          # [2N, F_in]

    kernel = _make_kernel(N, f_in, hidden, offs)
    out = pl.pallas_call(
        kernel,
        out_shape=jax.ShapeDtypeStruct((1, 1), jnp.float32),
        in_specs=[pl.BlockSpec(memory_space=pltpu.MemorySpace.VMEM)] * 3,
        out_specs=pl.BlockSpec(memory_space=pltpu.MemorySpace.SMEM),
    )(x_cat, A2, slab)
    return out[0, 0]


# ------------------------- pure-JAX reference (check) -------------------------
def infomax_reference(x, edge_index, node_cnt, params, perm):
    N = node_cnt
    src, dst = edge_index[0], edge_index[1]

    def sage(xx, wl, bl, wr, alpha):
        msg = xx[src]                                                  # [E, F]
        agg = jnp.zeros((N, xx.shape[1]), jnp.float32).at[dst].add(msg)
        cnt = jnp.zeros((N, 1), jnp.float32).at[dst].add(1.0)
        agg = agg / jnp.maximum(cnt, 1.0)
        h = agg @ wl + bl + xx @ wr
        h = h / jnp.maximum(jnp.linalg.norm(h, axis=-1, keepdims=True), 1e-12)
        return jnp.where(h > 0, h, alpha * h)

    def enc(xx):
        h = sage(xx, params["w1l"], params["b1l"], params["w1r"], params["alpha1"])
        return sage(h, params["w2l"], params["b2l"], params["w2r"], params["alpha2"])

    pos, neg = enc(x), enc(x[perm])
    summary = jax.nn.sigmoid(jnp.mean(pos, axis=0))
    v = params["wd"] @ summary
    lp, ln = pos @ v, neg @ v
    l1 = jnp.mean(jax.nn.softplus(-lp))
    l2 = jnp.mean(jax.nn.softplus(ln))
    return l1 + l2


# ---------------------------------- main ---------------------------------------
if __name__ == "__main__":
    N, F_IN, H = 16, 8, 32

    key = jax.random.PRNGKey(0)
    keys = jax.random.split(key, 10)

    # node features
    x = jax.random.normal(keys[0], (N, F_IN), jnp.float32)

    # deterministic edge_index: bidirectional ring graph -> [2, 2N]
    idx = jnp.arange(N, dtype=jnp.int32)
    nxt = (idx + 1) % N
    edge_index = jnp.stack([jnp.concatenate([idx, nxt]),
                            jnp.concatenate([nxt, idx])], axis=0)      # [2, 32]

    # deterministic "randperm" for the corrupted (negative) sample
    perm = jax.random.permutation(keys[1], N)

    # deterministic synthetic parameters (weights stored as [in, out])
    def uni(k, shape, bound):
        return jax.random.uniform(k, shape, jnp.float32, -bound, bound)

    params = {
        "w1l": uni(keys[2], (F_IN, H), 1.0 / jnp.sqrt(F_IN)),
        "b1l": uni(keys[3], (1, H), 1.0 / jnp.sqrt(F_IN)),
        "w1r": uni(keys[4], (F_IN, H), 1.0 / jnp.sqrt(F_IN)),
        "alpha1": jnp.full((1, H), 0.25, jnp.float32),   # PReLU default init
        "w2l": uni(keys[5], (H, H), 1.0 / jnp.sqrt(H)),
        "b2l": uni(keys[6], (1, H), 1.0 / jnp.sqrt(H)),
        "w2r": uni(keys[7], (H, H), 1.0 / jnp.sqrt(H)),
        "alpha2": jnp.full((1, H), 0.25, jnp.float32),
        "wd": uni(keys[8], (H, H), 1.0 / jnp.sqrt(H)),   # Discriminator uniform init
    }

    # One-time packing at init (hoisted out of the per-call jitted path).
    slab, offs, f_in, hidden = pack_params(params)
    slab = jax.block_until_ready(slab)

    loss = infomax_forward(x, edge_index, slab, perm,
                           node_cnt=N, f_in=f_in, hidden=hidden, offs=offs)
    loss = jax.block_until_ready(loss)

    ref = infomax_reference(x, edge_index, N, params, perm)
    assert jnp.allclose(loss, ref, atol=1e-5, rtol=1e-5), (loss, ref)

    # TODO(synk): torch.randperm corruption is reproduced with jax.random.permutation
    # (host-side glue); exact torch RNG stream is not reproducible by construction.
    print("KERNEL_OK")
</pallas_src>

<mosaic_0001>
module attributes {stable_mosaic.version = 11 : i64} {
  func.func private @main(%arg0: i32) attributes {dimension_semantics = [#tpu.dimension_semantics<core_parallel>], iteration_bounds = array<i64: 2>, tpu.core_type = #tpu.core_type<sc_scalar_subcore>, window_params = []} {
    return
  }
}

module attributes {stable_mosaic.version = 11 : i64} {
  func.func private @main(%arg0: i32) attributes {dimension_semantics = [#tpu.dimension_semantics<core_parallel>], iteration_bounds = array<i64: 2>, tpu.core_type = #tpu.core_type<sc_scalar_subcore>, window_params = []} {
    return
  }
}

module attributes {stable_mosaic.version = 11 : i64} {
  func.func @kernel(%arg0: memref<32x8xf32, #tpu.memory_space<vmem>>, %arg1: memref<32x32xf32, #tpu.memory_space<vmem>>, %arg2: memref<144x32xf32, #tpu.memory_space<vmem>>, %arg3: memref<1x1xf32, #tpu.memory_space<smem>>) attributes {dimension_semantics = [], scalar_prefetch = 0 : i64, scratch_operands = 0 : i64, tpu.core_type = #tpu.core_type<tc>} {
    %c0 = arith.constant 0 : index
    %c0_0 = arith.constant 0 : index
    %0 = vector.load %arg1[%c0, %c0_0] : memref<32x32xf32, #tpu.memory_space<vmem>>, vector<32x32xf32>
    %c0_1 = arith.constant 0 : index
    %c0_2 = arith.constant 0 : index
    %1 = vector.load %arg0[%c0_1, %c0_2] : memref<32x8xf32, #tpu.memory_space<vmem>>, vector<32x8xf32>
    %c0_3 = arith.constant 0 : index
    %c0_4 = arith.constant 0 : index
    %2 = vector.load %arg2[%c0_3, %c0_4] : memref<144x32xf32, #tpu.memory_space<vmem>>, vector<16x32xf32>
    %c16 = arith.constant 16 : index
    %c0_5 = arith.constant 0 : index
    %3 = vector.load %arg2[%c16, %c0_5] : memref<144x32xf32, #tpu.memory_space<vmem>>, vector<1x32xf32>
    %c24 = arith.constant 24 : index
    %c0_6 = arith.constant 0 : index
    %4 = vector.load %arg2[%c24, %c0_6] : memref<144x32xf32, #tpu.memory_space<vmem>>, vector<1x32xf32>
    %c32 = arith.constant 32 : index
    %c0_7 = arith.constant 0 : index
    %5 = vector.load %arg2[%c32, %c0_7] : memref<144x32xf32, #tpu.memory_space<vmem>>, vector<64x32xf32>
    %c96 = arith.constant 96 : index
    %c0_8 = arith.constant 0 : index
    %6 = vector.load %arg2[%c96, %c0_8] : memref<144x32xf32, #tpu.memory_space<vmem>>, vector<1x32xf32>
    %c104 = arith.constant 104 : index
    %c0_9 = arith.constant 0 : index
    %7 = vector.load %arg2[%c104, %c0_9] : memref<144x32xf32, #tpu.memory_space<vmem>>, vector<1x32xf32>
    %c112 = arith.constant 112 : index
    %c0_10 = arith.constant 0 : index
    %8 = vector.load %arg2[%c112, %c0_10] : memref<144x32xf32, #tpu.memory_space<vmem>>, vector<32x32xf32>
    %cst = arith.constant dense<0.000000e+00> : vector<32x8xf32>
    %9 = tpu.matmul %0, %1, %cst {dimension_numbers = #tpu.dot_dimension_numbers<[1], [0], [0], [1], [0, 0, 1, 1], [], []>} : vector<32x32xf32>, vector<32x8xf32>, vector<32x8xf32> -> vector<32x8xf32>
    %10 = tpu.concatenate %9, %1 in 1 : vector<32x8xf32>, vector<32x8xf32> -> vector<32x16xf32>
    %cst_11 = arith.constant dense<0.000000e+00> : vector<32x32xf32>
    %11 = tpu.matmul %10, %2, %cst_11 {dimension_numbers = #tpu.dot_dimension_numbers<[1], [0], [0], [1], [0, 0, 1, 1], [], []>} : vector<32x16xf32>, vector<16x32xf32>, vector<32x32xf32> -> vector<32x32xf32>
    %12 = vector.broadcast %3 : vector<1x32xf32> to vector<32x32xf32>
    %13 = arith.addf %11, %12 : vector<32x32xf32>
    %14 = arith.mulf %13, %13 : vector<32x32xf32>
    %cst_12 = arith.constant dense<0.000000e+00> : vector<32xf32>
    %15 = vector.multi_reduction <add>, %14, %cst_12 [1] : vector<32x32xf32> to vector<32xf32>
    %16 = vector.shape_cast %15 : vector<32xf32> to vector<32x1xf32>
    %cst_13 = arith.constant 1.000000e-24 : f32
    %17 = vector.broadcast %cst_13 : f32 to vector<32x1xf32>
    %18 = arith.maximumf %16, %17 : vector<32x1xf32>
    %19 = math.rsqrt %18 : vector<32x1xf32>
    %20 = vector.broadcast %19 : vector<32x1xf32> to vector<32x32xf32>
    %21 = arith.mulf %13, %20 : vector<32x32xf32>
    %cst_14 = arith.constant 0.000000e+00 : f32
    %22 = vector.broadcast %cst_14 : f32 to vector<32x32xf32>
    %23 = arith.cmpf ogt, %21, %22 : vector<32x32xf32>
    %24 = vector.broadcast %4 : vector<1x32xf32> to vector<32x32xf32>
    %25 = arith.mulf %24, %21 : vector<32x32xf32>
    %26 = arith.select %23, %21, %25 : vector<32x32xi1>, vector<32x32xf32>
    %cst_15 = arith.constant dense<0.000000e+00> : vector<32x32xf32>
    %27 = tpu.matmul %0, %26, %cst_15 {dimension_numbers = #tpu.dot_dimension_numbers<[1], [0], [0], [1], [0, 0, 1, 1], [], []>} : vector<32x32xf32>, vector<32x32xf32>, vector<32x32xf32> -> vector<32x32xf32>
    %28 = tpu.concatenate %27, %26 in 1 : vector<32x32xf32>, vector<32x32xf32> -> vector<32x64xf32>
    %cst_16 = arith.constant dense<0.000000e+00> : vector<32x32xf32>
    %29 = tpu.matmul %28, %5, %cst_16 {dimension_numbers = #tpu.dot_dimension_numbers<[1], [0], [0], [1], [0, 0, 1, 1], [], []>} : vector<32x64xf32>, vector<64x32xf32>, vector<32x32xf32> -> vector<32x32xf32>
    %30 = vector.broadcast %6 : vector<1x32xf32> to vector<32x32xf32>
    %31 = arith.addf %29, %30 : vector<32x32xf32>
    %32 = arith.mulf %31, %31 : vector<32x32xf32>
    %cst_17 = arith.constant dense<0.000000e+00> : vector<32xf32>
    %33 = vector.multi_reduction <add>, %32, %cst_17 [1] : vector<32x32xf32> to vector<32xf32>
    %34 = vector.shape_cast %33 : vector<32xf32> to vector<32x1xf32>
    %cst_18 = arith.constant 1.000000e-24 : f32
    %35 = vector.broadcast %cst_18 : f32 to vector<32x1xf32>
    %36 = arith.maximumf %34, %35 : vector<32x1xf32>
    %37 = math.rsqrt %36 : vector<32x1xf32>
    %38 = vector.broadcast %37 : vector<32x1xf32> to vector<32x32xf32>
    %39 = arith.mulf %31, %38 : vector<32x32xf32>
    %cst_19 = arith.constant 0.000000e+00 : f32
    %40 = vector.broadcast %cst_19 : f32 to vector<32x32xf32>
    %41 = arith.cmpf ogt, %39, %40 : vector<32x32xf32>
    %42 = vector.broadcast %7 : vector<1x32xf32> to vector<32x32xf32>
    %43 = arith.mulf %42, %39 : vector<32x32xf32>
    %44 = arith.select %41, %39, %43 : vector<32x32xi1>, vector<32x32xf32>
    %45 = vector.extract_strided_slice %44 {offsets = [0, 0], sizes = [16, 32], strides = [1, 1]} : vector<32x32xf32> to vector<16x32xf32>
    %cst_20 = arith.constant dense<0.000000e+00> : vector<32xf32>
    %46 = vector.multi_reduction <add>, %45, %cst_20 [0] : vector<16x32xf32> to vector<32xf32>
    %47 = vector.shape_cast %46 : vector<32xf32> to vector<1x32xf32>
    %cst_21 = arith.constant 1.600000e+01 : f32
    %48 = vector.broadcast %cst_21 : f32 to vector<1x32xf32>
    %49 = arith.divf %47, %48 : vector<1x32xf32>
    %50 = arith.negf %49 : vector<1x32xf32>
    %51 = math.exp %50 : vector<1x32xf32>
    %cst_22 = arith.constant 1.000000e+00 : f32
    %52 = vector.broadcast %cst_22 : f32 to vector<1x32xf32>
    %53 = arith.addf %52, %51 : vector<1x32xf32>
    %54 = arith.divf %52, %53 : vector<1x32xf32>
    %cst_23 = arith.constant dense<0.000000e+00> : vector<1x32xf32>
    %55 = tpu.matmul %54, %8, %cst_23 {dimension_numbers = #tpu.dot_dimension_numbers<[1], [0], [0], [1], [0, 0, 1, 1], [], []>} : vector<1x32xf32>, vector<32x32xf32>, vector<1x32xf32> -> vector<1x32xf32>
    %56 = vector.broadcast %55 : vector<1x32xf32> to vector<32x32xf32>
    %57 = arith.mulf %44, %56 : vector<32x32xf32>
    %cst_24 = arith.constant dense<0.000000e+00> : vector<32xf32>
    %58 = vector.multi_reduction <add>, %57, %cst_24 [1] : vector<32x32xf32> to vector<32xf32>
    %59 = vector.shape_cast %58 : vector<32xf32> to vector<32x1xf32>
    %60 = vector.extract_strided_slice %59 {offsets = [0, 0], sizes = [16, 1], strides = [1, 1]} : vector<32x1xf32> to vector<16x1xf32>
    %cst_25 = arith.constant 0.000000e+00 : f32
    %61 = vector.broadcast %cst_25 : f32 to vector<16x1xf32>
    %62 = arith.subf %61, %60 : vector<16x1xf32>
    %cst_26 = arith.constant 0.000000e+00 : f32
    %63 = vector.broadcast %cst_26 : f32 to vector<16x1xf32>
    %64 = arith.maximumf %62, %63 : vector<16x1xf32>
    %65 = math.absf %62 : vector<16x1xf32>
    %cst_27 = arith.constant 0.000000e+00 : f32
    %66 = vector.broadcast %cst_27 : f32 to vector<16x1xf32>
    %67 = arith.subf %66, %65 : vector<16x1xf32>
    %68 = math.exp %67 : vector<16x1xf32>
    %69 = math.log1p %68 : vector<16x1xf32>
    %70 = arith.addf %64, %69 : vector<16x1xf32>
    %71 = vector.shape_cast %70 : vector<16x1xf32> to vector<1x16x1xf32>
    %cst_28 = arith.constant dense<0.000000e+00> : vector<1xf32>
    %72 = vector.multi_reduction <add>, %71, %cst_28 [1, 2] : vector<1x16x1xf32> to vector<1xf32>
    %73 = vector.shape_cast %72 : vector<1xf32> to vector<1x1x1xf32>
    %74 = vector.extract %73[0, 0, 0] : f32 from vector<1x1x1xf32>
    %75 = vector.extract_strided_slice %59 {offsets = [16, 0], sizes = [16, 1], strides = [1, 1]} : vector<32x1xf32> to vector<16x1xf32>
    %cst_29 = arith.constant 0.000000e+00 : f32
    %76 = vector.broadcast %cst_29 : f32 to vector<16x1xf32>
    %77 = arith.maximumf %75, %76 : vector<16x1xf32>
    %78 = math.absf %75 : vector<16x1xf32>
    %cst_30 = arith.constant 0.000000e+00 : f32
    %79 = vector.broadcast %cst_30 : f32 to vector<16x1xf32>
    %80 = arith.subf %79, %78 : vector<16x1xf32>
    %81 = math.exp %80 : vector<16x1xf32>
    %82 = math.log1p %81 : vector<16x1xf32>
    %83 = arith.addf %77, %82 : vector<16x1xf32>
    %84 = vector.shape_cast %83 : vector<16x1xf32> to vector<1x16x1xf32>
    %cst_31 = arith.constant dense<0.000000e+00> : vector<1xf32>
    %85 = vector.multi_reduction <add>, %84, %cst_31 [1, 2] : vector<1x16x1xf32> to vector<1xf32>
    %86 = vector.shape_cast %85 : vector<1xf32> to vector<1x1x1xf32>
    %87 = vector.extract %86[0, 0, 0] : f32 from vector<1x1x1xf32>
    %88 = arith.addf %74, %87 : f32
    %cst_32 = arith.constant 6.250000e-02 : f32
    %89 = arith.mulf %88, %cst_32 : f32
    %c0_33 = arith.constant 0 : index
    %c0_34 = arith.constant 0 : index
    %90 = memref.load %arg3[%c0_33, %c0_34] : memref<1x1xf32, #tpu.memory_space<smem>>
    memref.store %89, %arg3[%c0_33, %c0_34] : memref<1x1xf32, #tpu.memory_space<smem>>
    return
  }
}

</mosaic_0001>

<llo_original>
// kernel: infomax_forward.1
$region0: #{infomax_forward.1}
  #allocation0 [shape = 'u32[]', space=smem, size = 0x4, offset = 0x4, fixed_abs, tag = 'smem constant byte address 0x4 - core index']
  #allocation1 [shape = 'u32[144,128]{1,0:T(1,128)}', space=vmem, size = 0x12000, scoped, tag = 'internal scratch']
  %s0 = inlined_call_operand.vmem [shape: f32[32,8], index: 0, kind: input, shape index: {}]
  %s1 = inlined_call_operand.vmem [shape: f32[32,32], index: 1, kind: input, shape index: {}]
  %s2 = inlined_call_operand.vmem [shape: f32[144,32], index: 2, kind: input, shape index: {}]
  %s3 = inlined_call_operand.hbm [shape: f32[1,1], index: 3, kind: output, shape index: {}]
  %s4 = sld [smem:[#allocation0]]
  $region22: #{infomax_forward.1} parent=0
    _
  %s6 = ssub.s32 1, %s4
  %s7 = scalar_select 0, %s6, %s4
  $region1: #{infomax_forward.1} parent=0
    #allocation2 [shape = 'u8[512]{0}', space=smem, size = 0x200, scoped, tag = 'output window, operand 0, single buffered']
    #allocation3 [shape = 's32[1]{0}', space=sflag, size = 0x4, scoped, tag = 'scoped memory for infomax_forward.1']
    %8 = vsyncpa [#allocation3], 0
    // Predicated region
    $region2: #{infomax_forward.1} parent=1 // pred_check
      _
    $region3: #{infomax_forward.1} parent=1 // pred_check_branch
      %10 = sbr.rel (0) target = $region5
    $region4: #{infomax_forward.1} parent=1 // pred_region
      _
    $region5: #{infomax_forward.1} parent=1 // pred_fallthru
      _
    // Predicated region
    $region6: #{infomax_forward.1} parent=1 // pred_check
      _
    $region7: #{infomax_forward.1} parent=1 // pred_check_branch
      %12 = sbr.rel (0) target = $region9
    $region8: #{infomax_forward.1} parent=1 // pred_region
      _
    $region9: #{infomax_forward.1} parent=1 // pred_fallthru
      _
    // Predicated region
    $region10: #{infomax_forward.1} parent=1 // pred_check
      _
    $region11: #{infomax_forward.1} parent=1 // pred_check_branch
      %14 = sbr.rel (0) target = $region13
    $region12: #{infomax_forward.1} parent=1 // pred_region
      _
    $region13: #{infomax_forward.1} parent=1 // pred_fallthru
      _
    %v15 = vld [vmem:[%s1] sm:$0xff]
    %v16 = vld [vmem:[%s1 + $0x8] sm:$0xff]
    %v17 = vld [vmem:[%s1 + $0x10] sm:$0xff]
    %v18 = vld [vmem:[%s1 + $0x18] sm:$0xff]
    %v19 = vld [vmem:[%s0] sm:$0xff]
    %v20 = vld [vmem:[%s0 + $0x8] sm:$0xff]
    %v21 = vld [vmem:[%s0 + $0x10] sm:$0xff]
    %v22 = vld [vmem:[%s0 + $0x18] sm:$0xff]
    %v23 = vld [vmem:[%s2] sm:$0xff]
    %v24 = vld [vmem:[%s2 + $0x8] sm:$0xff]
    %v25 = vld [vmem:[%s2 + $0x10] sm:$0x1]
    %v26 = vld [vmem:[%s2 + $0x18] sm:$0x1]
    %v27 = vld [vmem:[%s2 + $0x20] sm:$0xff]
    %v28 = vld [vmem:[%s2 + $0x28] sm:$0xff]
    %v29 = vld [vmem:[%s2 + $0x30] sm:$0xff]
    %v30 = vld [vmem:[%s2 + $0x38] sm:$0xff]
    %v31 = vld [vmem:[%s2 + $0x40] sm:$0xff]
    %v32 = vld [vmem:[%s2 + $0x48] sm:$0xff]
    %v33 = vld [vmem:[%s2 + $0x50] sm:$0xff]
    %v34 = vld [vmem:[%s2 + $0x58] sm:$0xff]
    %v35 = vld [vmem:[%s2 + $0x60] sm:$0x1]
    %v36 = vld [vmem:[%s2 + $0x68] sm:$0x1]
    %v37 = vld [vmem:[%s2 + $0x70] sm:$0xff]
    %v38 = vld [vmem:[%s2 + $0x78] sm:$0xff]
    %v39 = vld [vmem:[%s2 + $0x80] sm:$0xff]
    %v40 = vld [vmem:[%s2 + $0x88] sm:$0xff]
    %vm41 = vcmask 261120
    %v43 = vsel %vm41, %v15, 0
    %v46 = vsel %vm41, %v16, 0
    %v49 = vsel %vm41, %v17, 0
    %v52 = vsel %vm41, %v18, 0
    %54 = vmatprep.subr.mxu0 0.0
    %55 = vmatpush1.msra.mxu0 0.0
    %56 = vmatprep.subr.mxu0 0.0
    %57 = vmatpush1.msra.mxu0 0.0
    %58 = vmatprep.subr.mxu0 0.0
    %59 = vmatpush1.msra.mxu0 0.0
    %60 = vmatprep.subr.mxu0 0.0
    %61 = vmatpush1.msra.mxu0 0.0
    %62 = vmatprep.subr.mxu0 0.0
    %63 = vmatpush1.msra.mxu0 0.0
    %64 = vmatprep.subr.mxu0 0.0
    %65 = vmatpush1.msra.mxu0 0.0
    %66 = vmatprep.subr.mxu0 0.0
    %67 = vmatpush1.msra.mxu0 0.0
    %68 = vmatprep.subr.mxu0 0.0
    %69 = vmatpush1.msra.mxu0 0.0
    %70 = vmatprep.subr.mxu0 0.0
    %71 = vmatpush1.msra.mxu0 0.0
    %72 = vmatprep.subr.mxu0 0.0
    %73 = vmatpush1.msra.mxu0 0.0
    %74 = vmatprep.subr.mxu0 0.0
    %75 = vmatpush1.msra.mxu0 0.0
    %76 = vmatprep.subr.mxu0 0.0
    %77 = vmatpush1.msra.mxu0 0.0
    %78 = vmatprep.subr.mxu0 0.0
    %79 = vmatpush1.msra.mxu0 %v22
    %80 = vmatprep.subr.mxu0 0.0
    %81 = vmatpush1.msra.mxu0 %v21
    %82 = vmatprep.subr.mxu0 0.0
    %83 = vmatpush1.msra.mxu0 %v20
    %84 = vmatprep.subr.mxu0 0.0
    %85 = vmatpush1.msra.mxu0 %v19
    %86 = vmatprep.subr.mxu0 0.0
    %87 = vmatpush2.msra.mxu0 0.0
    %88 = vmatprep.subr.mxu0 0.0
    %89 = vmatpush2.msra.mxu0 0.0
    %90 = vmatprep.subr.mxu0 0.0
    %91 = vmatpush2.msra.mxu0 0.0
    %92 = vmatprep.subr.mxu0 0.0
    %93 = vmatpush2.msra.mxu0 0.0
    %94 = vmatprep.subr.mxu0 0.0
    %95 = vmatpush2.msra.mxu0 0.0
    %96 = vmatprep.subr.mxu0 0.0
    %97 = vmatpush2.msra.mxu0 0.0
    %98 = vmatprep.subr.mxu0 0.0
    %99 = vmatpush2.msra.mxu0 0.0
    %100 = vmatprep.subr.mxu0 0.0
    %101 = vmatpush2.msra.mxu0 0.0
    %102 = vmatprep.subr.mxu0 0.0
    %103 = vmatpush2.msra.mxu0 0.0
    %104 = vmatprep.subr.mxu0 0.0
    %105 = vmatpush2.msra.mxu0 0.0
    %106 = vmatprep.subr.mxu0 0.0
    %107 = vmatpush2.msra.mxu0 0.0
    %108 = vmatprep.subr.mxu0 0.0
    %109 = vmatpush2.msra.mxu0 0.0
    %110 = vmatprep.subr.mxu0 0.0
    %111 = vmatpush2.msra.mxu0 0.0
    %112 = vmatprep.subr.mxu0 0.0
    %113 = vmatpush2.msra.mxu0 0.0
    %114 = vmatprep.subr.mxu0 0.0
    %115 = vmatpush2.msra.mxu0 0.0
    %116 = vmatprep.subr.mxu0 0.0
    %117 = vmatpush2.msra.mxu0 0.0
    %118 = vmatprep.mubr.f32.mxu0 0.0
    %119 = vmatmul.mubr.f32.gmra.mxu0 %v43
    %v120 = vpop.f32.mrf.mxu0
    %v121 = vadd.f32 0.0, %v120
    %v122 = vpop.f32.mrf.mxu0
    %123 = vmatprep.mubr.f32.mxu0 0.0
    %124 = vmatmul.mubr.f32.gmra.mxu0 %v46
    %v125 = vpop.f32.mrf.mxu0
    %v126 = vadd.f32 0.0, %v125
    %v127 = vpop.f32.mrf.mxu0
    %128 = vmatprep.mubr.f32.mxu0 0.0
    %129 = vmatmul.mubr.f32.gmra.mxu0 %v49
    %v130 = vpop.f32.mrf.mxu0
    %v131 = vadd.f32 0.0, %v130
    %v132 = vpop.f32.mrf.mxu0
    %133 = vmatprep.mubr.f32.mxu0 0.0
    %134 = vmatmul.mubr.f32.gmra.mxu0 %v52
    %v135 = vpop.f32.mrf.mxu0
    %v136 = vadd.f32 0.0, %v135
    %v137 = vpop.f32.mrf.mxu0
    %138 = vdwg.mxu0
    %143 = vrot.lane.b32.xlu0 %v19, 8
    %v144 = vpop.permute.xlu0 %143
    %145 = vrot.lane.b32.xlu0 %v20, 8
    %v146 = vpop.permute.xlu0 %145
    %147 = vrot.lane.b32.xlu0 %v21, 8
    %v148 = vpop.permute.xlu0 %147
    %149 = vrot.lane.b32.xlu0 %v22, 8
    %v150 = vpop.permute.xlu0 %149
    %vm155 = vcmask 64512
    %v156 = vsel %vm155, %v121, %v144
    %v157 = vsel %vm155, %v126, %v146
    %v158 = vsel %vm155, %v131, %v148
    %v159 = vsel %vm155, %v136, %v150
    %v160 = vlaneseq
    %v161 = vshrl.u32 %v160, 7
    %v162 = vsub.s32 0, %v161
    %v163 = vrot.slane %v25, %v162
    %vm164 = vcmask 130048
    %v166 = vsel %vm164, %v156, 0
    %v169 = vsel %vm164, %v157, 0
    %v172 = vsel %vm164, %v158, 0
    %v175 = vsel %vm164, %v159, 0
    %177 = vmatprep.subr.mxu0 0.0
    %178 = vmatpush1.msra.mxu0 0.0
    %179 = vmatprep.subr.mxu0 0.0
    %180 = vmatpush1.msra.mxu0 0.0
    %181 = vmatprep.subr.mxu0 0.0
    %182 = vmatpush1.msra.mxu0 0.0
    %183 = vmatprep.subr.mxu0 0.0
    %184 = vmatpush1.msra.mxu0 0.0
    %185 = vmatprep.subr.mxu0 0.0
    %186 = vmatpush1.msra.mxu0 0.0
    %187 = vmatprep.subr.mxu0 0.0
    %188 = vmatpush1.msra.mxu0 0.0
    %189 = vmatprep.subr.mxu0 0.0
    %190 = vmatpush1.msra.mxu0 0.0
    %191 = vmatprep.subr.mxu0 0.0
    %192 = vmatpush1.msra.mxu0 0.0
    %193 = vmatprep.subr.mxu0 0.0
    %194 = vmatpush1.msra.mxu0 0.0
    %195 = vmatprep.subr.mxu0 0.0
    %196 = vmatpush1.msra.mxu0 0.0
    %197 = vmatprep.subr.mxu0 0.0
    %198 = vmatpush1.msra.mxu0 0.0
    %199 = vmatprep.subr.mxu0 0.0
    %200 = vmatpush1.msra.mxu0 0.0
    %201 = vmatprep.subr.mxu0 0.0
    %202 = vmatpush1.msra.mxu0 0.0
    %203 = vmatprep.subr.mxu0 0.0
    %204 = vmatpush1.msra.mxu0 0.0
    %205 = vmatprep.subr.mxu0 0.0
    %206 = vmatpush1.msra.mxu0 %v24
    %207 = vmatprep.subr.mxu0 0.0
    %208 = vmatpush1.msra.mxu0 %v23
    %209 = vmatprep.subr.mxu0 0.0
    %210 = vmatpush2.msra.mxu0 0.0
    %211 = vmatprep.subr.mxu0 0.0
    %212 = vmatpush2.msra.mxu0 0.0
    %213 = vmatprep.subr.mxu0 0.0
    %214 = vmatpush2.msra.mxu0 0.0
    %215 = vmatprep.subr.mxu0 0.0
    %216 = vmatpush2.msra.mxu0 0.0
    %217 = vmatprep.subr.mxu0 0.0
    %218 = vmatpush2.msra.mxu0 0.0
    %219 = vmatprep.subr.mxu0 0.0
    %220 = vmatpush2.msra.mxu0 0.0
    %221 = vmatprep.subr.mxu0 0.0
    %222 = vmatpush2.msra.mxu0 0.0
    %223 = vmatprep.subr.mxu0 0.0
    %224 = vmatpush2.msra.mxu0 0.0
    %225 = vmatprep.subr.mxu0 0.0
    %226 = vmatpush2.msra.mxu0 0.0
    %227 = vmatprep.subr.mxu0 0.0
    %228 = vmatpush2.msra.mxu0 0.0
    %229 = vmatprep.subr.mxu0 0.0
    %230 = vmatpush2.msra.mxu0 0.0
    %231 = vmatprep.subr.mxu0 0.0
    %232 = vmatpush2.msra.mxu0 0.0
    %233 = vmatprep.subr.mxu0 0.0
    %234 = vmatpush2.msra.mxu0 0.0
    %235 = vmatprep.subr.mxu0 0.0
    %236 = vmatpush2.msra.mxu0 0.0
    %237 = vmatprep.subr.mxu0 0.0
    %238 = vmatpush2.msra.mxu0 0.0
    %239 = vmatprep.subr.mxu0 0.0
    %240 = vmatpush2.msra.mxu0 0.0
    %241 = vmatprep.mubr.f32.mxu0 0.0
    %242 = vmatmul.mubr.f32.gmra.mxu0 %v166
    %v243 = vpop.f32.mrf.mxu0
    %v244 = vadd.f32 %v163, %v243
    %v245 = vpop.f32.mrf.mxu0
    %246 = vmatprep.mubr.f32.mxu0 0.0
    %247 = vmatmul.mubr.f32.gmra.mxu0 %v169
    %v248 = vpop.f32.mrf.mxu0
    %v249 = vadd.f32 %v163, %v248
    %v250 = vpop.f32.mrf.mxu0
    %251 = vmatprep.mubr.f32.mxu0 0.0
    %252 = vmatmul.mubr.f32.gmra.mxu0 %v172
    %v253 = vpop.f32.mrf.mxu0
    %v254 = vadd.f32 %v163, %v253
    %v255 = vpop.f32.mrf.mxu0
    %256 = vmatprep.mubr.f32.mxu0 0.0
    %257 = vmatmul.mubr.f32.gmra.mxu0 %v175
    %v258 = vpop.f32.mrf.mxu0
    %v259 = vadd.f32 %v163, %v258
    %v260 = vpop.f32.mrf.mxu0
    %261 = vdwg.mxu0
    %v262 = vmul.f32 %v244, %v244
    %v263 = vmul.f32 %v249, %v249
    %v264 = vmul.f32 %v254, %v254
    %v265 = vmul.f32 %v259, %v259
    %v266 = vsel %vm41, %v262, 0.0
    %267 = vadd.xlane.f32.xlu0 %v266
    %v268 = vpop.xlane.xlu0 %267
    %v269 = vsel %vm41, %v263, 0.0
    %270 = vadd.xlane.f32.xlu0 %v269
    %v271 = vpop.xlane.xlu0 %270
    %v272 = vsel %vm41, %v264, 0.0
    %273 = vadd.xlane.f32.xlu0 %v272
    %v274 = vpop.xlane.xlu0 %273
    %v275 = vsel %vm41, %v265, 0.0
    %276 = vadd.xlane.f32.xlu0 %v275
    %v277 = vpop.xlane.xlu0 %276
    %v278 = vmax.f32 %v268, 1e-24
    %v279 = vmax.f32 %v271, 1e-24
    %v280 = vmax.f32 %v274, 1e-24
    %v281 = vmax.f32 %v277, 1e-24
    %v282 = vrsqrt.pop %v278
    %v283 = vrsqrt.pop %v279
    %v284 = vrsqrt.pop %v280
    %v285 = vrsqrt.pop %v281
    %v286 = vmul.f32 %v244, %v282
    %v287 = vmul.f32 %v249, %v283
    %v288 = vmul.f32 %v254, %v284
    %v289 = vmul.f32 %v259, %v285
    %vm290 = vcmp.gt.f32.partialorder %v286, 0.0
    %vm291 = vcmp.gt.f32.partialorder %v287, 0.0
    %vm292 = vcmp.gt.f32.partialorder %v288, 0.0
    %vm293 = vcmp.gt.f32.partialorder %v289, 0.0
    %v294 = vlaneseq
    %v295 = vshrl.u32 %v294, 7
    %v296 = vsub.s32 0, %v295
    %v297 = vrot.slane %v26, %v296
    %v298 = vmul.f32 %v297, %v286
    %v299 = vmul.f32 %v297, %v287
    %v300 = vmul.f32 %v297, %v288
    %v301 = vmul.f32 %v297, %v289
    %v302 = vsel %vm290, %v286, %v298
    %v303 = vsel %vm291, %v287, %v299
    %v304 = vsel %vm292, %v288, %v300
    %v305 = vsel %vm293, %v289, %v301
    %306 = vmatprep.subr.mxu0 0.0
    %307 = vmatpush1.msra.mxu0 0.0
    %308 = vmatprep.subr.mxu0 0.0
    %309 = vmatpush1.msra.mxu0 0.0
    %310 = vmatprep.subr.mxu0 0.0
    %311 = vmatpush1.msra.mxu0 0.0
    %312 = vmatprep.subr.mxu0 0.0
    %313 = vmatpush1.msra.mxu0 0.0
    %314 = vmatprep.subr.mxu0 0.0
    %315 = vmatpush1.msra.mxu0 0.0
    %316 = vmatprep.subr.mxu0 0.0
    %317 = vmatpush1.msra.mxu0 0.0
    %318 = vmatprep.subr.mxu0 0.0
    %319 = vmatpush1.msra.mxu0 0.0
    %320 = vmatprep.subr.mxu0 0.0
    %321 = vmatpush1.msra.mxu0 0.0
    %322 = vmatprep.subr.mxu0 0.0
    %323 = vmatpush1.msra.mxu0 0.0
    %324 = vmatprep.subr.mxu0 0.0
    %325 = vmatpush1.msra.mxu0 0.0
    %326 = vmatprep.subr.mxu0 0.0
    %327 = vmatpush1.msra.mxu0 0.0
    %328 = vmatprep.subr.mxu0 0.0
    %329 = vmatpush1.msra.mxu0 0.0
    %330 = vmatprep.subr.mxu0 0.0
    %331 = vmatpush1.msra.mxu0 %v305
    %332 = vmatprep.subr.mxu0 0.0
    %333 = vmatpush1.msra.mxu0 %v304
    %334 = vmatprep.subr.mxu0 0.0
    %335 = vmatpush1.msra.mxu0 %v303
    %336 = vmatprep.subr.mxu0 0.0
    %337 = vmatpush1.msra.mxu0 %v302
    %338 = vmatprep.subr.mxu0 0.0
    %339 = vmatpush2.msra.mxu0 0.0
    %340 = vmatprep.subr.mxu0 0.0
    %341 = vmatpush2.msra.mxu0 0.0
    %342 = vmatprep.subr.mxu0 0.0
    %343 = vmatpush2.msra.mxu0 0.0
    %344 = vmatprep.subr.mxu0 0.0
    %345 = vmatpush2.msra.mxu0 0.0
    %346 = vmatprep.subr.mxu0 0.0
    %347 = vmatpush2.msra.mxu0 0.0
    %348 = vmatprep.subr.mxu0 0.0
    %349 = vmatpush2.msra.mxu0 0.0
    %350 = vmatprep.subr.mxu0 0.0
    %351 = vmatpush2.msra.mxu0 0.0
    %352 = vmatprep.subr.mxu0 0.0
    %353 = vmatpush2.msra.mxu0 0.0
    %354 = vmatprep.subr.mxu0 0.0
    %355 = vmatpush2.msra.mxu0 0.0
    %356 = vmatprep.subr.mxu0 0.0
    %357 = vmatpush2.msra.mxu0 0.0
    %358 = vmatprep.subr.mxu0 0.0
    %359 = vmatpush2.msra.mxu0 0.0
    %360 = vmatprep.subr.mxu0 0.0
    %361 = vmatpush2.msra.mxu0 0.0
    %362 = vmatprep.subr.mxu0 0.0
    %363 = vmatpush2.msra.mxu0 0.0
    %364 = vmatprep.subr.mxu0 0.0
    %365 = vmatpush2.msra.mxu0 0.0
    %366 = vmatprep.subr.mxu0 0.0
    %367 = vmatpush2.msra.mxu0 0.0
    %368 = vmatprep.subr.mxu0 0.0
    %369 = vmatpush2.msra.mxu0 0.0
    %370 = vmatprep.mubr.f32.mxu0 0.0
    %371 = vmatmul.mubr.f32.gmra.mxu0 %v43
    %v372 = vpop.f32.mrf.mxu0
    %v373 = vadd.f32 0.0, %v372
    %v374 = vpop.f32.mrf.mxu0
    %375 = vmatprep.mubr.f32.mxu0 0.0
    %376 = vmatmul.mubr.f32.gmra.mxu0 %v46
    %v377 = vpop.f32.mrf.mxu0
    %v378 = vadd.f32 0.0, %v377
    %v379 = vpop.f32.mrf.mxu0
    %380 = vmatprep.mubr.f32.mxu0 0.0
    %381 = vmatmul.mubr.f32.gmra.mxu0 %v49
    %v382 = vpop.f32.mrf.mxu0
    %v383 = vadd.f32 0.0, %v382
    %v384 = vpop.f32.mrf.mxu0
    %385 = vmatprep.mubr.f32.mxu0 0.0
    %386 = vmatmul.mubr.f32.gmra.mxu0 %v52
    %v387 = vpop.f32.mrf.mxu0
    %v388 = vadd.f32 0.0, %v387
    %v389 = vpop.f32.mrf.mxu0
    %390 = vdwg.mxu0
    %395 = vrot.lane.b32.xlu0 %v302, 32
    %v396 = vpop.permute.xlu0 %395
    %397 = vrot.lane.b32.xlu0 %v303, 32
    %v398 = vpop.permute.xlu0 %397
    %399 = vrot.lane.b32.xlu0 %v304, 32
    %v400 = vpop.permute.xlu0 %399
    %401 = vrot.lane.b32.xlu0 %v305, 32
    %v402 = vpop.permute.xlu0 %401
    %v407 = vsel %vm41, %v373, %v396
    %v408 = vsel %vm41, %v378, %v398
    %v409 = vsel %vm41, %v383, %v400
    %v410 = vsel %vm41, %v388, %v402
    %v411 = vlaneseq
    %v412 = vshrl.u32 %v411, 7
    %v413 = vsub.s32 0, %v412
    %v414 = vrot.slane %v35, %v413
    %vm415 = vcmask 523264
    %v417 = vsel %vm415, %v407, 0
    %v420 = vsel %vm415, %v408, 0
    %v423 = vsel %vm415, %v409, 0
    %v426 = vsel %vm415, %v410, 0
    %428 = vmatprep.subr.mxu0 0.0
    %429 = vmatpush1.msra.mxu0 0.0
    %430 = vmatprep.subr.mxu0 0.0
    %431 = vmatpush1.msra.mxu0 0.0
    %432 = vmatprep.subr.mxu0 0.0
    %433 = vmatpush1.msra.mxu0 0.0
    %434 = vmatprep.subr.mxu0 0.0
    %435 = vmatpush1.msra.mxu0 0.0
    %436 = vmatprep.subr.mxu0 0.0
    %437 = vmatpush1.msra.mxu0 0.0
    %438 = vmatprep.subr.mxu0 0.0
    %439 = vmatpush1.msra.mxu0 0.0
    %440 = vmatprep.subr.mxu0 0.0
    %441 = vmatpush1.msra.mxu0 0.0
    %442 = vmatprep.subr.mxu0 0.0
    %443 = vmatpush1.msra.mxu0 0.0
    %444 = vmatprep.subr.mxu0 0.0
    %445 = vmatpush1.msra.mxu0 %v34
    %446 = vmatprep.subr.mxu0 0.0
    %447 = vmatpush1.msra.mxu0 %v33
    %448 = vmatprep.subr.mxu0 0.0
    %449 = vmatpush1.msra.mxu0 %v32
    %450 = vmatprep.subr.mxu0 0.0
    %451 = vmatpush1.msra.mxu0 %v31
    %452 = vmatprep.subr.mxu0 0.0
    %453 = vmatpush1.msra.mxu0 %v30
    %454 = vmatprep.subr.mxu0 0.0
    %455 = vmatpush1.msra.mxu0 %v29
    %456 = vmatprep.subr.mxu0 0.0
    %457 = vmatpush1.msra.mxu0 %v28
    %458 = vmatprep.subr.mxu0 0.0
    %459 = vmatpush1.msra.mxu0 %v27
    %460 = vmatprep.subr.mxu0 0.0
    %461 = vmatpush2.msra.mxu0 0.0
    %462 = vmatprep.subr.mxu0 0.0
    %463 = vmatpush2.msra.mxu0 0.0
    %464 = vmatprep.subr.mxu0 0.0
    %465 = vmatpush2.msra.mxu0 0.0
    %466 = vmatprep.subr.mxu0 0.0
    %467 = vmatpush2.msra.mxu0 0.0
    %468 = vmatprep.subr.mxu0 0.0
    %469 = vmatpush2.msra.mxu0 0.0
    %470 = vmatprep.subr.mxu0 0.0
    %471 = vmatpush2.msra.mxu0 0.0
    %472 = vmatprep.subr.mxu0 0.0
    %473 = vmatpush2.msra.mxu0 0.0
    %474 = vmatprep.subr.mxu0 0.0
    %475 = vmatpush2.msra.mxu0 0.0
    %476 = vmatprep.subr.mxu0 0.0
    %477 = vmatpush2.msra.mxu0 0.0
    %478 = vmatprep.subr.mxu0 0.0
    %479 = vmatpush2.msra.mxu0 0.0
    %480 = vmatprep.subr.mxu0 0.0
    %481 = vmatpush2.msra.mxu0 0.0
    %482 = vmatprep.subr.mxu0 0.0
    %483 = vmatpush2.msra.mxu0 0.0
    %484 = vmatprep.subr.mxu0 0.0
    %485 = vmatpush2.msra.mxu0 0.0
    %486 = vmatprep.subr.mxu0 0.0
    %487 = vmatpush2.msra.mxu0 0.0
    %488 = vmatprep.subr.mxu0 0.0
    %489 = vmatpush2.msra.mxu0 0.0
    %490 = vmatprep.subr.mxu0 0.0
    %491 = vmatpush2.msra.mxu0 0.0
    %492 = vmatprep.mubr.f32.mxu0 0.0
    %493 = vmatmul.mubr.f32.gmra.mxu0 %v417
    %v494 = vpop.f32.mrf.mxu0
    %v495 = vadd.f32 %v414, %v494
    %v496 = vpop.f32.mrf.mxu0
    %497 = vmatprep.mubr.f32.mxu0 0.0
    %498 = vmatmul.mubr.f32.gmra.mxu0 %v420
    %v499 = vpop.f32.mrf.mxu0
    %v500 = vadd.f32 %v414, %v499
    %v501 = vpop.f32.mrf.mxu0
    %502 = vmatprep.mubr.f32.mxu0 0.0
    %503 = vmatmul.mubr.f32.gmra.mxu0 %v423
    %v504 = vpop.f32.mrf.mxu0
    %v505 = vadd.f32 %v414, %v504
    %v506 = vpop.f32.mrf.mxu0
    %507 = vmatprep.mubr.f32.mxu0 0.0
    %508 = vmatmul.mubr.f32.gmra.mxu0 %v426
    %v509 = vpop.f32.mrf.mxu0
    %v510 = vadd.f32 %v414, %v509
    %v511 = vpop.f32.mrf.mxu0
    %512 = vdwg.mxu0
    %v513 = vmul.f32 %v495, %v495
    %v514 = vmul.f32 %v500, %v500
    %v515 = vmul.f32 %v505, %v505
    %v516 = vmul.f32 %v510, %v510
    %v517 = vsel %vm41, %v513, 0.0
    %518 = vadd.xlane.f32.xlu0 %v517
    %v519 = vpop.xlane.xlu0 %518
    %v520 = vsel %vm41, %v514, 0.0
    %521 = vadd.xlane.f32.xlu0 %v520
    %v522 = vpop.xlane.xlu0 %521
    %v523 = vsel %vm41, %v515, 0.0
    %524 = vadd.xlane.f32.xlu0 %v523
    %v525 = vpop.xlane.xlu0 %524
    %v526 = vsel %vm41, %v516, 0.0
    %527 = vadd.xlane.f32.xlu0 %v526
    %v528 = vpop.xlane.xlu0 %527
    %v529 = vmax.f32 %v519, 1e-24
    %v530 = vmax.f32 %v522, 1e-24
    %v531 = vmax.f32 %v525, 1e-24
    %v532 = vmax.f32 %v528, 1e-24
    %v533 = vrsqrt.pop %v529
    %v534 = vrsqrt.pop %v530
    %v535 = vrsqrt.pop %v531
    %v536 = vrsqrt.pop %v532
    %v537 = vmul.f32 %v495, %v533
    %v538 = vmul.f32 %v500, %v534
    %v539 = vmul.f32 %v505, %v535
    %v540 = vmul.f32 %v510, %v536
    %vm541 = vcmp.gt.f32.partialorder %v537, 0.0
    %vm542 = vcmp.gt.f32.partialorder %v538, 0.0
    %vm543 = vcmp.gt.f32.partialorder %v539, 0.0
    %vm544 = vcmp.gt.f32.partialorder %v540, 0.0
    %v545 = vlaneseq
    %v546 = vshrl.u32 %v545, 7
    %v547 = vsub.s32 0, %v546
    %v548 = vrot.slane %v36, %v547
    %v549 = vmul.f32 %v548, %v537
    %v550 = vmul.f32 %v548, %v538
    %v551 = vmul.f32 %v548, %v539
    %v552 = vmul.f32 %v548, %v540
    %v553 = vsel %vm541, %v537, %v549
    %v554 = vsel %vm542, %v538, %v550
    %v555 = vsel %vm543, %v539, %v551
    %v556 = vsel %vm544, %v540, %v552
    %v557 = vsel %vm41, %v553, 0.0
    %v558 = vsel %vm41, %v554, 0.0
    %v559 = vadd.f32 %v557, %v558
    %v560 = vrot.slane %v559, 4
    %v561 = vadd.f32 %v559, %v560
    %v562 = vrot.slane %v561, 2
    %v563 = vadd.f32 %v561, %v562
    %v564 = vrot.slane %v563, 1
    %v565 = vadd.f32 %v563, %v564
    %v566 = vrcp.pop 16.0
    %v567 = vmul.f32 %v565, %v566
    %v568 = vxor.u32 %v567, 2147483648
    %v569 = vmul.f32 %v568, 1.442695
    %v570 = vpow.pop %v569
    %v571 = vadd.f32 %v570, 1.0
    %v572 = vrcp.pop %v571
    %v573 = vmul.f32 1.0, %v572
    %v575 = vsel %vm41, %v573, 0
    %577 = vmatprep.subr.mxu0 0.0
    %578 = vmatpush1.msra.mxu0 0.0
    %579 = vmatprep.subr.mxu0 0.0
    %580 = vmatpush1.msra.mxu0 0.0
    %581 = vmatprep.subr.mxu0 0.0
    %582 = vmatpush1.msra.mxu0 0.0
    %583 = vmatprep.subr.mxu0 0.0
    %584 = vmatpush1.msra.mxu0 0.0
    %585 = vmatprep.subr.mxu0 0.0
    %586 = vmatpush1.msra.mxu0 0.0
    %587 = vmatprep.subr.mxu0 0.0
    %588 = vmatpush1.msra.mxu0 0.0
    %589 = vmatprep.subr.mxu0 0.0
    %590 = vmatpush1.msra.mxu0 0.0
    %591 = vmatprep.subr.mxu0 0.0
    %592 = vmatpush1.msra.mxu0 0.0
    %593 = vmatprep.subr.mxu0 0.0
    %594 = vmatpush1.msra.mxu0 0.0
    %595 = vmatprep.subr.mxu0 0.0
    %596 = vmatpush1.msra.mxu0 0.0
    %597 = vmatprep.subr.mxu0 0.0
    %598 = vmatpush1.msra.mxu0 0.0
    %599 = vmatprep.subr.mxu0 0.0
    %600 = vmatpush1.msra.mxu0 0.0
    %601 = vmatprep.subr.mxu0 0.0
    %602 = vmatpush1.msra.mxu0 %v40
    %603 = vmatprep.subr.mxu0 0.0
    %604 = vmatpush1.msra.mxu0 %v39
    %605 = vmatprep.subr.mxu0 0.0
    %606 = vmatpush1.msra.mxu0 %v38
    %607 = vmatprep.subr.mxu0 0.0
    %608 = vmatpush1.msra.mxu0 %v37
    %609 = vmatprep.subr.mxu0 0.0
    %610 = vmatpush2.msra.mxu0 0.0
    %611 = vmatprep.subr.mxu0 0.0
    %612 = vmatpush2.msra.mxu0 0.0
    %613 = vmatprep.subr.mxu0 0.0
    %614 = vmatpush2.msra.mxu0 0.0
    %615 = vmatprep.subr.mxu0 0.0
    %616 = vmatpush2.msra.mxu0 0.0
    %617 = vmatprep.subr.mxu0 0.0
    %618 = vmatpush2.msra.mxu0 0.0
    %619 = vmatprep.subr.mxu0 0.0
    %620 = vmatpush2.msra.mxu0 0.0
    %621 = vmatprep.subr.mxu0 0.0
    %622 = vmatpush2.msra.mxu0 0.0
    %623 = vmatprep.subr.mxu0 0.0
    %624 = vmatpush2.msra.mxu0 0.0
    %625 = vmatprep.subr.mxu0 0.0
    %626 = vmatpush2.msra.mxu0 0.0
    %627 = vmatprep.subr.mxu0 0.0
    %628 = vmatpush2.msra.mxu0 0.0
    %629 = vmatprep.subr.mxu0 0.0
    %630 = vmatpush2.msra.mxu0 0.0
    %631 = vmatprep.subr.mxu0 0.0
    %632 = vmatpush2.msra.mxu0 0.0
    %633 = vmatprep.subr.mxu0 0.0
    %634 = vmatpush2.msra.mxu0 0.0
    %635 = vmatprep.subr.mxu0 0.0
    %636 = vmatpush2.msra.mxu0 0.0
    %637 = vmatprep.subr.mxu0 0.0
    %638 = vmatpush2.msra.mxu0 0.0
    %639 = vmatprep.subr.mxu0 0.0
    %640 = vmatpush2.msra.mxu0 0.0
    %641 = vmatprep.mubr.f32.mxu0 0.0
    %642 = vmatmul.mubr.f32.gmra.mxu0 %v575
    %v643 = vpop.f32.mrf.mxu0
    %v644 = vadd.f32 0.0, %v643
    %v645 = vpop.f32.mrf.mxu0
    %646 = vdwg.mxu0
    %v647 = vlaneseq
    %v648 = vshrl.u32 %v647, 7
    %v649 = vsub.s32 0, %v648
    %v650 = vrot.slane %v644, %v649
    %v651 = vmul.f32 %v553, %v650
    %v652 = vmul.f32 %v554, %v650
    %v653 = vmul.f32 %v555, %v650
    %v654 = vmul.f32 %v556, %v650
    %v655 = vsel %vm41, %v651, 0.0
    %656 = vadd.xlane.f32.xlu0 %v655
    %v657 = vpop.xlane.xlu0 %656
    %v658 = vsel %vm41, %v652, 0.0
    %659 = vadd.xlane.f32.xlu0 %v658
    %v660 = vpop.xlane.xlu0 %659
    %v661 = vsel %vm41, %v653, 0.0
    %662 = vadd.xlane.f32.xlu0 %v661
    %v663 = vpop.xlane.xlu0 %662
    %v664 = vsel %vm41, %v654, 0.0
    %665 = vadd.xlane.f32.xlu0 %v664
    %v666 = vpop.xlane.xlu0 %665
    %v667 = vsub.f32 0.0, %v657
    %v668 = vsub.f32 0.0, %v660
    %v669 = vmax.f32 %v667, 0.0
    %v670 = vmax.f32 %v668, 0.0
    %v671 = vand.u32 2147483647, %v667
    %v672 = vand.u32 2147483647, %v668
    %v673 = vsub.f32 0.0, %v671
    %v674 = vsub.f32 0.0, %v672
    %v675 = vmul.f32 %v673, 1.442695
    %v676 = vpow.pop %v675
    %v677 = vmul.f32 %v674, 1.442695
    %v678 = vpow.pop %v677
    %v679 = vadd.f32 %v676, 1.0
    %v680 = vlog2.pop %v679
    %v681 = vmul.f32 %v680, 0.6931472
    %v682 = vmul.f32 -0.5, %v676
    %v683 = vadd.f32 %v682, 1.0
    %v684 = vmul.f32 %v683, %v676
    %v685 = vand.u32 2147483647, %v676
    %vm686 = vcmp.lt.f32.partialorder %v685, 0.0004427343
    %v687 = vsel %vm686, %v684, %v681
    %v688 = vadd.f32 %v678, 1.0
    %v689 = vlog2.pop %v688
    %v690 = vmul.f32 %v689, 0.6931472
    %v691 = vmul.f32 -0.5, %v678
    %v692 = vadd.f32 %v691, 1.0
    %v693 = vmul.f32 %v692, %v678
    %v694 = vand.u32 2147483647, %v678
    %vm695 = vcmp.lt.f32.partialorder %v694, 0.0004427343
    %v696 = vsel %vm695, %v693, %v690
    %v697 = vadd.f32 %v669, %v687
    %v698 = vadd.f32 %v670, %v696
    %vm699 = vcmask 7168
    %v700 = vsel %vm699, %v697, 0.0
    %v701 = vsel %vm699, %v698, 0.0
    %v702 = vadd.f32 %v700, %v701
    %703 = vadd.xlane.f32.xlu0 %v702
    %v704 = vpop.xlane.xlu0 %703
    %v705 = vrot.slane %v704, 4
    %v706 = vadd.f32 %v704, %v705
    %v707 = vrot.slane %v706, 2
    %v708 = vadd.f32 %v706, %v707
    %v709 = vrot.slane %v708, 1
    %v710 = vadd.f32 %v708, %v709
    %s711 = vtos %v710
    %v712 = vmax.f32 %v663, 0.0
    %v713 = vmax.f32 %v666, 0.0
    %v714 = vand.u32 2147483647, %v663
    %v715 = vand.u32 2147483647, %v666
    %v716 = vsub.f32 0.0, %v714
    %v717 = vsub.f32 0.0, %v715
    %v718 = vmul.f32 %v716, 1.442695
    %v719 = vpow.pop %v718
    %v720 = vmul.f32 %v717, 1.442695
    %v721 = vpow.pop %v720
    %v722 = vadd.f32 %v719, 1.0
    %v723 = vlog2.pop %v722
    %v724 = vmul.f32 %v723, 0.6931472
    %v725 = vmul.f32 -0.5, %v719
    %v726 = vadd.f32 %v725, 1.0
    %v727 = vmul.f32 %v726, %v719
    %v728 = vand.u32 2147483647, %v719
    %vm729 = vcmp.lt.f32.partialorder %v728, 0.0004427343
    %v730 = vsel %vm729, %v727, %v724
    %v731 = vadd.f32 %v721, 1.0
    %v732 = vlog2.pop %v731
    %v733 = vmul.f32 %v732, 0.6931472
    %v734 = vmul.f32 -0.5, %v721
    %v735 = vadd.f32 %v734, 1.0
    %v736 = vmul.f32 %v735, %v721
    %v737 = vand.u32 2147483647, %v721
    %vm738 = vcmp.lt.f32.partialorder %v737, 0.0004427343
    %v739 = vsel %vm738, %v736, %v733
    %v740 = vadd.f32 %v712, %v730
    %v741 = vadd.f32 %v713, %v739
    %v742 = vsel %vm699, %v740, 0.0
    %v743 = vsel %vm699, %v741, 0.0
    %v744 = vadd.f32 %v742, %v743
    %745 = vadd.xlane.f32.xlu0 %v744
    %v746 = vpop.xlane.xlu0 %745
    %v747 = vrot.slane %v746, 4
    %v748 = vadd.f32 %v746, %v747
    %v749 = vrot.slane %v748, 2
    %v750 = vadd.f32 %v748, %v749
    %v751 = vrot.slane %v750, 1
    %v752 = vadd.f32 %v750, %v751
    %s753 = vtos %v752
    %s754 = sadd.f32 %s711, %s753
    %s755 = smul.f32 %s754, 0.0625
    %s756 = scalar_lea.smem [#allocation2], 0
    %757 = sst [smem:[%s756]] %s755
    // Predicated region
    $region14: #{infomax_forward.1} parent=1 // pred_check
      _
    $region15: #{infomax_forward.1} parent=1 // pred_check_branch
      %759 = sbr.rel (0) target = $region17
    $region16: #{infomax_forward.1} parent=1 // pred_region
      %s761 = ssub.s32 16, 16
      %762 = vsyncadd [#allocation3], %s761
      %765 = dma.smem_to_hbm [#allocation2], 16, %s3, [#allocation3]
    $region17: #{infomax_forward.1} parent=1 // pred_fallthru
      _
    // Predicated region
    $region18: #{infomax_forward.1} parent=1 // pred_check
      _
    $region19: #{infomax_forward.1} parent=1 // pred_check_branch
      %767 = sbr.rel (0) target = $region21
    $region20: #{infomax_forward.1} parent=1 // pred_region
      %768 = dma.done [#allocation3], 16
    $region21: #{infomax_forward.1} parent=1 // pred_fallthru
      _
    %769 = sfence
    %770 = vsyncpa [#allocation3], 1

</llo_original>
